<compile_context>
chip_gen: v7x
topology: tpu7x:2x2x1
jax: 0.10.0
libtpu: 0.0.40
codegen_flags: <defaults>
</compile_context>

<pallas_src>
import functools

import jax
import jax.numpy as jnp
from jax import lax
from jax.experimental import pallas as pl
from jax.experimental.pallas import tpu as pltpu


def _gamma_decoder_kernel(*refs, num_hidden, out_dim, max_k, max_th):
    """One batch tile: hidden MLP stack + fused (kappa|theta) head."""
    x_ref = refs[0]
    layer_refs = refs[1:1 + 2 * num_hidden]          # [w_i, shift_i] * num_hidden
    wh_ref = refs[1 + 2 * num_hidden]                # (h_last, 2*out_dim) fused head
    out_ref = refs[2 + 2 * num_hidden]               # (bt, 2*out_dim) fused kappa|theta

    h = x_ref[...]
    for i in range(num_hidden):
        w = layer_refs[2 * i][...]                   # (in_i, h_i), BN scale pre-folded
        shift = layer_refs[2 * i + 1][...]           # (1, h_i) = (bias - mean)*scale + beta
        y = jnp.dot(h.astype(w.dtype), w, preferred_element_type=jnp.float32)
        # TODO(synk): constructor takes an arbitrary `activation`; ReLU assumed here.
        h = jnp.maximum(y + shift, 0.0)
        # Dropout is the identity in eval mode.

    y = jnp.dot(h.astype(wh_ref.dtype), wh_ref[...],
                preferred_element_type=jnp.float32)
    # Per-column Hardtanh upper bound: first out_dim columns -> max_k, rest -> max_th.
    col = lax.broadcasted_iota(jnp.int32, (1, 2 * out_dim), 1)
    hi = jnp.where(col < out_dim, max_k, max_th)
    out_ref[...] = (jnp.minimum(jnp.maximum(y, 0.0), hi) + 0.001).astype(out_ref.dtype)


def gamma_decoder_forward(x, ws, bs, gammas, betas, means, variances,
                          w_kappa, w_theta, *, max_k=4.0, max_th=5.0,
                          eps=1e-5, batch_tile=1024, matmul_dtype=jnp.float32):
    """Eval-mode GammaDecoder forward.

    x: (B, latent_dim) f32
    ws[i]: (hidden_i, in_i) torch Linear layout;  bs[i]: (hidden_i,)
    gammas/betas/means/variances[i]: (hidden_i,) BatchNorm1d eval-mode params
    w_kappa / w_theta: (out_dim, hidden_last), bias=False
    Returns (kappa, theta), each (B, out_dim).
    """
    B, latent = x.shape
    num_hidden = len(ws)
    out_dim = w_kappa.shape[0]
    h_last = ws[-1].shape[0]
    out_dtype = x.dtype

    # --- lane-dense latent: zero-pad the K dim of the first matmul to a multiple of 128.
    lat_pad = max(128, ((latent + 127) // 128) * 128)
    if lat_pad != latent:
        x = jnp.pad(x, ((0, 0), (0, lat_pad - latent)))

    # --- batch tiling: tiles as large as possible but >= 2 "parallel" grid steps
    #     (v7x megacore); sublane(8)-aligned; batch zero-padded to a tile multiple.
    nb = max(2, -(-B // batch_tile))
    bt = ((-(-B // nb)) + 7) // 8 * 8
    B_pad = nb * bt
    if B_pad != B:
        x = jnp.pad(x, ((0, B_pad - B), (0, 0)))

    inputs = [x]
    in_specs = [pl.BlockSpec((bt, lat_pad), lambda i: (i, 0))]
    vmem = 2 * bt * lat_pad * jnp.dtype(x.dtype).itemsize        # double-buffered x tile
    bytes_accessed = int(x.size) * x.dtype.itemsize
    flops = 0

    in_dim = lat_pad
    for li in range(num_hidden):
        h_i = ws[li].shape[0]
        scale = (gammas[li] / jnp.sqrt(variances[li] + eps)).astype(jnp.float32)
        shift = ((bs[li] - means[li]) * scale + betas[li]).astype(jnp.float32)
        # Fold BN scale into the (pre-transposed) weight columns.
        w_t = (ws[li].astype(jnp.float32).T * scale[None, :])    # (in_i, h_i)
        if li == 0 and lat_pad != latent:
            w_t = jnp.pad(w_t, ((0, lat_pad - latent), (0, 0)))
        w_t = w_t.astype(matmul_dtype)
        inputs += [w_t, shift.reshape(1, h_i)]
        in_specs += [pl.BlockSpec(tuple(w_t.shape), lambda i: (0, 0)),   # resident weight
                     pl.BlockSpec((1, h_i), lambda i: (0, 0))]
        w_bytes = int(w_t.size) * w_t.dtype.itemsize
        vmem += 2 * (w_bytes + h_i * 4)
        bytes_accessed += w_bytes + h_i * 4
        flops += 2 * B_pad * in_dim * h_i
        in_dim = h_i

    # Fused kappa|theta head: one (h_last, 2*out_dim) operand, one MXU matmul,
    # one 2*out_dim-wide lane-dense output store.
    w_heads = jnp.concatenate([w_kappa, w_theta], axis=0).astype(jnp.float32)
    w_heads = w_heads.T.astype(matmul_dtype)                     # (h_last, 2*out_dim)
    inputs.append(w_heads)
    in_specs.append(pl.BlockSpec((h_last, 2 * out_dim), lambda i: (0, 0)))
    wh_bytes = int(w_heads.size) * w_heads.dtype.itemsize
    vmem += 2 * wh_bytes
    bytes_accessed += wh_bytes
    flops += 2 * B_pad * h_last * (2 * out_dim)

    out_shape = jax.ShapeDtypeStruct((B_pad, 2 * out_dim), out_dtype)
    out_specs = pl.BlockSpec((bt, 2 * out_dim), lambda i: (i, 0))
    vmem += 2 * bt * 2 * out_dim * jnp.dtype(out_dtype).itemsize
    bytes_accessed += B_pad * 2 * out_dim * jnp.dtype(out_dtype).itemsize

    # Headroom for the f32 intermediates of the widest layer.
    max_width = max([lat_pad] + [int(w.shape[0]) for w in ws] + [2 * out_dim])
    vmem += 4 * bt * max_width * 4
    # Only ever raise above the 32 MiB scoped default; cap at v7x physical VMEM.
    vmem_limit = min(64 << 20, max(int(vmem) + (2 << 20), 32 << 20))

    kernel = functools.partial(_gamma_decoder_kernel, num_hidden=num_hidden,
                               out_dim=out_dim, max_k=float(max_k),
                               max_th=float(max_th))

    fused = pl.pallas_call(
        kernel,
        out_shape=out_shape,
        grid_spec=pltpu.PrefetchScalarGridSpec(
            num_scalar_prefetch=0,
            grid=(nb,),
            in_specs=in_specs,
            out_specs=out_specs,
        ),
        compiler_params=pltpu.CompilerParams(
            dimension_semantics=("parallel",),
            vmem_limit_bytes=vmem_limit),
        cost_estimate=pl.CostEstimate(flops=int(flops), transcendentals=0,
                                      bytes_accessed=int(bytes_accessed)),
    )(*inputs)

    kappa = fused[:B, :out_dim]
    theta = fused[:B, out_dim:]
    return kappa, theta


def _reference_forward(x, ws, bs, gammas, betas, means, variances,
                       w_kappa, w_theta, max_k, max_th, eps):
    prec = lax.Precision.HIGHEST
    h = x
    for i in range(len(ws)):
        h = jnp.dot(h, ws[i].T, precision=prec) + bs[i]
        h = (h - means[i]) / jnp.sqrt(variances[i] + eps) * gammas[i] + betas[i]
        h = jnp.maximum(h, 0.0)
    k = jnp.clip(jnp.dot(h, w_kappa.T, precision=prec), 0.0, max_k) + 0.001
    t = jnp.clip(jnp.dot(h, w_theta.T, precision=prec), 0.0, max_th) + 0.001
    return k, t


def _xavier_uniform(key, shape):
    fan_out, fan_in = shape
    bound = (6.0 / (fan_in + fan_out)) ** 0.5
    return jax.random.uniform(key, shape, minval=-bound, maxval=bound,
                              dtype=jnp.float32)


if __name__ == "__main__":
    key = jax.random.PRNGKey(0)

    B, latent_dim = 250, 32          # non-multiple batch exercises the padding path
    hidden_layers = (128, 128)
    out_dim = 128
    max_k, max_th = 4.0, 5.0

    keys = jax.random.split(key, 16)
    x = jax.random.normal(keys[0], (B, latent_dim), dtype=jnp.float32)

    ws, bs, gammas, betas, means, variances = [], [], [], [], [], []
    in_dim = latent_dim
    for i, h in enumerate(hidden_layers):
        ws.append(_xavier_uniform(keys[1 + i], (h, in_dim)))
        bs.append(jnp.zeros((h,), jnp.float32))   # init_emb fills bias with 0
        gammas.append(1.0 + 0.5 * jax.random.normal(keys[5 + i], (h,), dtype=jnp.float32))
        betas.append(0.1 * jax.random.normal(keys[8 + i], (h,), dtype=jnp.float32))
        means.append(0.1 * jax.random.normal(keys[11 + i], (h,), dtype=jnp.float32))
        variances.append(0.5 + jax.random.uniform(keys[14], (h,), dtype=jnp.float32))
        in_dim = h

    w_kappa = _xavier_uniform(keys[3], (out_dim, hidden_layers[-1]))
    w_theta = _xavier_uniform(keys[4], (out_dim, hidden_layers[-1]))

    k_ref, t_ref = _reference_forward(
        x, ws, bs, gammas, betas, means, variances, w_kappa, w_theta,
        max_k, max_th, 1e-5)

    # f32 matmul path: tight check against the eval-mode reference.
    kappa, theta = gamma_decoder_forward(
        x, ws, bs, gammas, betas, means, variances, w_kappa, w_theta,
        max_k=max_k, max_th=max_th, matmul_dtype=jnp.float32)
    kappa, theta = jax.block_until_ready((kappa, theta))
    assert kappa.shape == (B, out_dim) and theta.shape == (B, out_dim)
    assert jnp.allclose(kappa, k_ref, atol=1e-3, rtol=1e-3), "kappa mismatch (f32)"
    assert jnp.allclose(theta, t_ref, atol=1e-3, rtol=1e-3), "theta mismatch (f32)"

    # bf16 matmul-operand path (v6e/v7x MXU rate), f32 accumulation + f32 epilogue.
    kappa_bf, theta_bf = gamma_decoder_forward(
        x, ws, bs, gammas, betas, means, variances, w_kappa, w_theta,
        max_k=max_k, max_th=max_th, matmul_dtype=jnp.bfloat16)
    kappa_bf, theta_bf = jax.block_until_ready((kappa_bf, theta_bf))
    assert jnp.allclose(kappa_bf, k_ref, atol=1e-1, rtol=1e-1), "kappa mismatch (bf16)"
    assert jnp.allclose(theta_bf, t_ref, atol=1e-1, rtol=1e-1), "theta mismatch (bf16)"

    print("KERNEL_OK")
</pallas_src>

<mosaic_0001>
module attributes {stable_mosaic.version = 11 : i64} {
  func.func @_gamma_decoder_kernel(%arg0: i32, %arg1: memref<128x128xf32, #tpu.memory_space<vmem>>, %arg2: memref<128x128xf32, #tpu.memory_space<vmem>>, %arg3: memref<1x128xf32, #tpu.memory_space<vmem>>, %arg4: memref<128x128xf32, #tpu.memory_space<vmem>>, %arg5: memref<1x128xf32, #tpu.memory_space<vmem>>, %arg6: memref<128x256xf32, #tpu.memory_space<vmem>>, %arg7: memref<128x256xf32, #tpu.memory_space<vmem>>) attributes {dimension_semantics = [#tpu.dimension_semantics<parallel>], iteration_bounds = array<i64: 2>, scalar_prefetch = 0 : i64, scratch_operands = 0 : i64, tpu.core_type = #tpu.core_type<tc>, window_params = [{transform_indices = @transform_0, window_bounds = array<i64: 128, 128>}, {pipeline_mode = #tpu.pipeline_mode<synchronous>, transform_indices = @transform_1, window_bounds = array<i64: 128, 128>}, {pipeline_mode = #tpu.pipeline_mode<synchronous>, transform_indices = @transform_2, window_bounds = array<i64: 1, 128>}, {pipeline_mode = #tpu.pipeline_mode<synchronous>, transform_indices = @transform_3, window_bounds = array<i64: 128, 128>}, {pipeline_mode = #tpu.pipeline_mode<synchronous>, transform_indices = @transform_4, window_bounds = array<i64: 1, 128>}, {pipeline_mode = #tpu.pipeline_mode<synchronous>, transform_indices = @transform_5, window_bounds = array<i64: 128, 256>}, {transform_indices = @transform_6, window_bounds = array<i64: 128, 256>}]} {
    %c0 = arith.constant 0 : index
    %c0_0 = arith.constant 0 : index
    %0 = vector.load %arg1[%c0, %c0_0] : memref<128x128xf32, #tpu.memory_space<vmem>>, vector<128x128xf32>
    %c0_1 = arith.constant 0 : index
    %c0_2 = arith.constant 0 : index
    %1 = vector.load %arg2[%c0_1, %c0_2] : memref<128x128xf32, #tpu.memory_space<vmem>>, vector<128x128xf32>
    %c0_3 = arith.constant 0 : index
    %c0_4 = arith.constant 0 : index
    %2 = vector.load %arg3[%c0_3, %c0_4] : memref<1x128xf32, #tpu.memory_space<vmem>>, vector<1x128xf32>
    %cst = arith.constant dense<0.000000e+00> : vector<128x128xf32>
    %3 = tpu.matmul %0, %1, %cst {dimension_numbers = #tpu.dot_dimension_numbers<[1], [0], [0], [1], [0, 0, 1, 1], [], []>} : vector<128x128xf32>, vector<128x128xf32>, vector<128x128xf32> -> vector<128x128xf32>
    %4 = vector.broadcast %2 : vector<1x128xf32> to vector<128x128xf32>
    %5 = arith.addf %3, %4 : vector<128x128xf32>
    %cst_5 = arith.constant 0.000000e+00 : f32
    %6 = vector.broadcast %cst_5 : f32 to vector<128x128xf32>
    %7 = arith.maximumf %5, %6 : vector<128x128xf32>
    %c0_6 = arith.constant 0 : index
    %c0_7 = arith.constant 0 : index
    %8 = vector.load %arg4[%c0_6, %c0_7] : memref<128x128xf32, #tpu.memory_space<vmem>>, vector<128x128xf32>
    %c0_8 = arith.constant 0 : index
    %c0_9 = arith.constant 0 : index
    %9 = vector.load %arg5[%c0_8, %c0_9] : memref<1x128xf32, #tpu.memory_space<vmem>>, vector<1x128xf32>
    %cst_10 = arith.constant dense<0.000000e+00> : vector<128x128xf32>
    %10 = tpu.matmul %7, %8, %cst_10 {dimension_numbers = #tpu.dot_dimension_numbers<[1], [0], [0], [1], [0, 0, 1, 1], [], []>} : vector<128x128xf32>, vector<128x128xf32>, vector<128x128xf32> -> vector<128x128xf32>
    %11 = vector.broadcast %9 : vector<1x128xf32> to vector<128x128xf32>
    %12 = arith.addf %10, %11 : vector<128x128xf32>
    %cst_11 = arith.constant 0.000000e+00 : f32
    %13 = vector.broadcast %cst_11 : f32 to vector<128x128xf32>
    %14 = arith.maximumf %12, %13 : vector<128x128xf32>
    %c0_12 = arith.constant 0 : index
    %c0_13 = arith.constant 0 : index
    %15 = vector.load %arg6[%c0_12, %c0_13] : memref<128x256xf32, #tpu.memory_space<vmem>>, vector<128x256xf32>
    %cst_14 = arith.constant dense<0.000000e+00> : vector<128x256xf32>
    %16 = tpu.matmul %14, %15, %cst_14 {dimension_numbers = #tpu.dot_dimension_numbers<[1], [0], [0], [1], [0, 0, 1, 1], [], []>} : vector<128x128xf32>, vector<128x256xf32>, vector<128x256xf32> -> vector<128x256xf32>
    %17 = tpu.iota {dimensions = array<i32: 1>} : vector<1x256xi32>
    %c128_i32 = arith.constant 128 : i32
    %18 = vector.broadcast %c128_i32 : i32 to vector<1x256xi32>
    %19 = arith.cmpi slt, %17, %18 : vector<1x256xi32>
    %cst_15 = arith.constant 4.000000e+00 : f32
    %cst_16 = arith.constant 5.000000e+00 : f32
    %20 = vector.broadcast %cst_15 : f32 to vector<1x256xf32>
    %21 = vector.broadcast %cst_16 : f32 to vector<1x256xf32>
    %22 = arith.select %19, %20, %21 : vector<1x256xi1>, vector<1x256xf32>
    %cst_17 = arith.constant 0.000000e+00 : f32
    %23 = vector.broadcast %cst_17 : f32 to vector<128x256xf32>
    %24 = arith.maximumf %16, %23 : vector<128x256xf32>
    %25 = vector.broadcast %22 : vector<1x256xf32> to vector<128x256xf32>
    %26 = arith.minimumf %24, %25 : vector<128x256xf32>
    %cst_18 = arith.constant 1.000000e-03 : f32
    %27 = vector.broadcast %cst_18 : f32 to vector<128x256xf32>
    %28 = arith.addf %26, %27 : vector<128x256xf32>
    %c0_19 = arith.constant 0 : index
    %c0_20 = arith.constant 0 : index
    %29 = vector.load %arg7[%c0_19, %c0_20] : memref<128x256xf32, #tpu.memory_space<vmem>>, vector<128x256xf32>
    tpu.vector_store %arg7[%c0_19, %c0_20], %28 {strides = array<i32>} : memref<128x256xf32, #tpu.memory_space<vmem>>, vector<128x256xf32>,
    return
  }
  func.func @transform_0(%arg0: i32) -> (i32, i32) {
    %c0_i32 = arith.constant 0 : i32
    %c0_i32_0 = arith.constant 0 : i32
    return %arg0, %c0_i32 : i32, i32
  }
  func.func @transform_1(%arg0: i32) -> (i32, i32) {
    %c0_i32 = arith.constant 0 : i32
    %c0_i32_0 = arith.constant 0 : i32
    %c0_i32_1 = arith.constant 0 : i32
    return %c0_i32, %c0_i32_0 : i32, i32
  }
  func.func @transform_2(%arg0: i32) -> (i32, i32) {
    %c0_i32 = arith.constant 0 : i32
    %c0_i32_0 = arith.constant 0 : i32
    %c0_i32_1 = arith.constant 0 : i32
    return %c0_i32, %c0_i32_0 : i32, i32
  }
  func.func @transform_3(%arg0: i32) -> (i32, i32) {
    %c0_i32 = arith.constant 0 : i32
    %c0_i32_0 = arith.constant 0 : i32
    %c0_i32_1 = arith.constant 0 : i32
    return %c0_i32, %c0_i32_0 : i32, i32
  }
  func.func @transform_4(%arg0: i32) -> (i32, i32) {
    %c0_i32 = arith.constant 0 : i32
    %c0_i32_0 = arith.constant 0 : i32
    %c0_i32_1 = arith.constant 0 : i32
    return %c0_i32, %c0_i32_0 : i32, i32
  }
  func.func @transform_5(%arg0: i32) -> (i32, i32) {
    %c0_i32 = arith.constant 0 : i32
    %c0_i32_0 = arith.constant 0 : i32
    %c0_i32_1 = arith.constant 0 : i32
    return %c0_i32, %c0_i32_0 : i32, i32
  }
  func.func @transform_6(%arg0: i32) -> (i32, i32) {
    %c0_i32 = arith.constant 0 : i32
    %c0_i32_0 = arith.constant 0 : i32
    return %arg0, %c0_i32 : i32, i32
  }
}

</mosaic_0001>

<llo_original>
// kernel: tpu_custom_call.1
$region0: #{tpu_custom_call.1}
  #allocation0 [shape = 'u32[]', space=smem, size = 0x4, offset = 0x4, fixed_abs, tag = 'smem constant byte address 0x4 - core index']
  #allocation1 [shape = 'u32[144,128]{1,0:T(1,128)}', space=vmem, size = 0x12000, scoped, tag = 'internal scratch']
  %s0 = inlined_call_operand.hbm [shape: f32[256,128], index: 0, kind: input, shape index: {}]
  %s1 = inlined_call_operand.hbm [shape: f32[128,128], index: 1, kind: input, shape index: {}]
  %s2 = inlined_call_operand.vmem [shape: f32[1,128], index: 2, kind: input, shape index: {}]
  %s3 = inlined_call_operand.hbm [shape: f32[128,128], index: 3, kind: input, shape index: {}]
  %s4 = inlined_call_operand.vmem [shape: f32[1,128], index: 4, kind: input, shape index: {}]
  %s5 = inlined_call_operand.hbm [shape: f32[128,256], index: 5, kind: input, shape index: {}]
  %s6 = inlined_call_operand.hbm [shape: f32[256,256], index: 6, kind: output, shape index: {}]
  %s7 = sld [smem:[#allocation0]]
  $region73: #{tpu_custom_call.1} parent=0
    _
  %s9 = ssub.s32 1, %s7
  %s10 = scalar_select 0, %s9, %s7
  $region1: #{tpu_custom_call.1} parent=0
    #allocation2 [shape = 'u8[131072]{0}', space=vmem, size = 0x20000, scoped, tag = 'input window, operand 0']
    #allocation3 [shape = 's32[2]{0}', space=sflag, size = 0x8, scoped, tag = 'scoped memory for tpu_custom_call.1']
    #allocation4 [shape = 's32[2]{0}', space=sflag, size = 0x8, scoped, tag = 'scoped memory for tpu_custom_call.1']
    #allocation5 [shape = 'u8[65536]{0}', space=vmem, size = 0x10000, scoped, tag = 'input window, operand 1, single buffered']
    #allocation6 [shape = 's32[1]{0}', space=sflag, size = 0x4, scoped, tag = 'scoped memory for tpu_custom_call.1']
    #allocation7 [shape = 'u8[65536]{0}', space=vmem, size = 0x10000, scoped, tag = 'input window, operand 3, single buffered']
    #allocation8 [shape = 'u8[131072]{0}', space=vmem, size = 0x20000, scoped, tag = 'input window, operand 5, single buffered']
    #allocation9 [shape = 's32[1]{0}', space=sflag, size = 0x4, scoped, tag = 'scoped memory for tpu_custom_call.1']
    #allocation10 [shape = 'u8[262144]{0}', space=vmem, size = 0x40000, scoped, tag = 'output window, operand 0']
    %11 = vsyncpa [#allocation3], 0
    %s12 = scalar_lea.sflag [#allocation3], 1
    %13 = vsyncpa %s12, 0
    %14 = vsyncpa [#allocation6], 0
    %15 = vsyncpa [#allocation9], 0
    %16 = vsyncpa [#allocation4], 0
    %s17 = scalar_lea.sflag [#allocation4], 1
    %18 = vsyncpa %s17, 0
    loop: start=0, step=1, limit=4
    $region2: #{tpu_custom_call.1} parent=1 // loop_pre_header
      _
    $region3: #{tpu_custom_call.1} parent=1 // loop_header
      %s20 = sphi 0, %s24
      %p21 = scmp.ge.s32.totalorder %s20, 4
      %s30 = sphi 0, %s32
      %s33 = sphi 0, %s30
      %s34 = sphi 0, %s33
      %s50 = sphi 0, %s34
      %s54 = sphi 0, %s54
      %s56 = sphi 0, %s54
      %s57 = sphi 0, %s56
      %s71 = sphi 0, %s57
      %s75 = sphi 0, %s75
      %s77 = sphi 0, %s75
      %s78 = sphi 0, %s77
      %s92 = sphi 0, %s78
      %s96 = sphi 0, %s96
      %s98 = sphi 0, %s96
      %s99 = sphi 0, %s98
      %s113 = sphi 0, %s99
      %s117 = sphi 0, %s117
      %s119 = sphi 0, %s117
      %s120 = sphi 0, %s119
      %s134 = sphi 0, %s120
      %s138 = sphi 0, %s138
      %s140 = sphi 0, %s138
      %s141 = sphi 0, %s140
      %s155 = sphi 0, %s141
      %s161 = sphi 0, %s163
      %s164 = sphi 0, %s161
      %s165 = sphi 0, %s164
      %s181 = sphi 0, %s165
    $region4: #{tpu_custom_call.1} parent=1 // loop_header_branch
      %23 = sbr.rel (%p21) target = $region8
    $region5: #{tpu_custom_call.1} parent=1 // loop_body
      %s25 = ssub.s32 %s20, 1
      %s26 = ssub.s32 %s20, 2
      %s27 = sadd.s32 %s20, 1
      %s28 = ssub.s32 %s20, %s27
      %p29 = scmp.eq.s32.totalorder %s28, 0
      %s31 = sadd.s32 %s30, 1
      %s32 = scalar_select %p29, %s30, %s31
      %p35 = pneg %p29
      %p36 = scmp.eq.s32.totalorder %s20, 1
      %p37 = por %p35, %p36
      %p38 = scmp.ne.s32.totalorder %s30, %s33
      %p39 = scmp.eq.s32.totalorder %s20, 0
      %p40 = por %p38, %p39
      %p41 = scmp.ne.s32.totalorder %s30, %s33
      %p42 = scmp.eq.s32.totalorder %s25, 1
      %p43 = por %p41, %p42
      %p44 = scmp.ne.s32.totalorder %s33, %s34
      %p45 = scmp.eq.s32.totalorder %s25, 0
      %p46 = por %p44, %p45
      %p47 = scmp.ne.s32.totalorder %s33, %s34
      %p48 = scmp.eq.s32.totalorder %s26, 1
      %p49 = por %p47, %p48
      %p51 = scmp.ne.s32.totalorder %s34, %s50
      %p52 = scmp.eq.s32.totalorder %s26, 0
      %p53 = por %p51, %p52
      %s55 = sadd.s32 %s54, 1
      %p58 = scmp.eq.s32.totalorder %s20, 1
      %p59 = scmp.ne.s32.totalorder %s54, %s56
      %p60 = scmp.eq.s32.totalorder %s20, 0
      %p61 = por %p59, %p60
      %p62 = scmp.ne.s32.totalorder %s54, %s56
      %p63 = scmp.eq.s32.totalorder %s25, 1
      %p64 = por %p62, %p63
      %p65 = scmp.ne.s32.totalorder %s56, %s57
      %p66 = scmp.eq.s32.totalorder %s25, 0
      %p67 = por %p65, %p66
      %p68 = scmp.ne.s32.totalorder %s56, %s57
      %p69 = scmp.eq.s32.totalorder %s26, 1
      %p70 = por %p68, %p69
      %p72 = scmp.ne.s32.totalorder %s57, %s71
      %p73 = scmp.eq.s32.totalorder %s26, 0
      %p74 = por %p72, %p73
      %s76 = sadd.s32 %s75, 1
      %p79 = scmp.eq.s32.totalorder %s20, 1
      %p80 = scmp.ne.s32.totalorder %s75, %s77
      %p81 = scmp.eq.s32.totalorder %s20, 0
      %p82 = por %p80, %p81
      %p83 = scmp.ne.s32.totalorder %s75, %s77
      %p84 = scmp.eq.s32.totalorder %s25, 1
      %p85 = por %p83, %p84
      %p86 = scmp.ne.s32.totalorder %s77, %s78
      %p87 = scmp.eq.s32.totalorder %s25, 0
      %p88 = por %p86, %p87
      %p89 = scmp.ne.s32.totalorder %s77, %s78
      %p90 = scmp.eq.s32.totalorder %s26, 1
      %p91 = por %p89, %p90
      %p93 = scmp.ne.s32.totalorder %s78, %s92
      %p94 = scmp.eq.s32.totalorder %s26, 0
      %p95 = por %p93, %p94
      %s97 = sadd.s32 %s96, 1
      %p100 = scmp.eq.s32.totalorder %s20, 1
      %p101 = scmp.ne.s32.totalorder %s96, %s98
      %p102 = scmp.eq.s32.totalorder %s20, 0
      %p103 = por %p101, %p102
      %p104 = scmp.ne.s32.totalorder %s96, %s98
      %p105 = scmp.eq.s32.totalorder %s25, 1
      %p106 = por %p104, %p105
      %p107 = scmp.ne.s32.totalorder %s98, %s99
      %p108 = scmp.eq.s32.totalorder %s25, 0
      %p109 = por %p107, %p108
      %p110 = scmp.ne.s32.totalorder %s98, %s99
      %p111 = scmp.eq.s32.totalorder %s26, 1
      %p112 = por %p110, %p111
      %p114 = scmp.ne.s32.totalorder %s99, %s113
      %p115 = scmp.eq.s32.totalorder %s26, 0
      %p116 = por %p114, %p115
      %s118 = sadd.s32 %s117, 1
      %p121 = scmp.eq.s32.totalorder %s20, 1
      %p122 = scmp.ne.s32.totalorder %s117, %s119
      %p123 = scmp.eq.s32.totalorder %s20, 0
      %p124 = por %p122, %p123
      %p125 = scmp.ne.s32.totalorder %s117, %s119
      %p126 = scmp.eq.s32.totalorder %s25, 1
      %p127 = por %p125, %p126
      %p128 = scmp.ne.s32.totalorder %s119, %s120
      %p129 = scmp.eq.s32.totalorder %s25, 0
      %p130 = por %p128, %p129
      %p131 = scmp.ne.s32.totalorder %s119, %s120
      %p132 = scmp.eq.s32.totalorder %s26, 1
      %p133 = por %p131, %p132
      %p135 = scmp.ne.s32.totalorder %s120, %s134
      %p136 = scmp.eq.s32.totalorder %s26, 0
      %p137 = por %p135, %p136
      %s139 = sadd.s32 %s138, 1
      %p142 = scmp.eq.s32.totalorder %s20, 1
      %p143 = scmp.ne.s32.totalorder %s138, %s140
      %p144 = scmp.eq.s32.totalorder %s20, 0
      %p145 = por %p143, %p144
      %p146 = scmp.ne.s32.totalorder %s138, %s140
      %p147 = scmp.eq.s32.totalorder %s25, 1
      %p148 = por %p146, %p147
      %p149 = scmp.ne.s32.totalorder %s140, %s141
      %p150 = scmp.eq.s32.totalorder %s25, 0
      %p151 = por %p149, %p150
      %p152 = scmp.ne.s32.totalorder %s140, %s141
      %p153 = scmp.eq.s32.totalorder %s26, 1
      %p154 = por %p152, %p153
      %p156 = scmp.ne.s32.totalorder %s141, %s155
      %p157 = scmp.eq.s32.totalorder %s26, 0
      %p158 = por %p156, %p157
      %s159 = ssub.s32 %s20, %s27
      %p160 = scmp.eq.s32.totalorder %s159, 0
      %s162 = sadd.s32 %s161, 1
      %s163 = scalar_select %p160, %s161, %s162
      %p166 = pneg %p160
      %p167 = scmp.eq.s32.totalorder %s20, 1
      %p168 = por %p166, %p167
      %p169 = scmp.ne.s32.totalorder %s161, %s164
      %p170 = scmp.eq.s32.totalorder %s20, 0
      %p171 = por %p169, %p170
      %p172 = scmp.ne.s32.totalorder %s161, %s164
      %p173 = scmp.eq.s32.totalorder %s25, 1
      %p174 = por %p172, %p173
      %p175 = scmp.ne.s32.totalorder %s164, %s165
      %p176 = scmp.eq.s32.totalorder %s25, 0
      %p177 = por %p175, %p176
      %p178 = scmp.ne.s32.totalorder %s164, %s165
      %p179 = scmp.eq.s32.totalorder %s26, 1
      %p180 = por %p178, %p179
      %p182 = scmp.ne.s32.totalorder %s165, %s181
      %p183 = scmp.eq.s32.totalorder %s26, 0
      %p184 = por %p182, %p183
      %p185 = scmp.le.s32.totalorder 1, %s20
      %p186 = scmp.lt.s32.totalorder %s20, 3
      %p187 = pnand %p185, %p186
      %p188 = pneg %p187
      // Predicated region
      $region9: #{tpu_custom_call.1} parent=5 // pred_check
        _
      $region10: #{tpu_custom_call.1} parent=5 // pred_check_branch
        %190 = sbr.rel (%p187) target = $region12
      $region11: #{tpu_custom_call.1} parent=5 // pred_region
        %s191 = ssub.s32 %s20, 1
        // Predicated region
        $region13: #{tpu_custom_call.1} parent=11 // pred_check
          %p192 = pneg %p67
        $region14: #{tpu_custom_call.1} parent=11 // pred_check_branch
          %194 = sbr.rel (%p192) target = $region16
        $region15: #{tpu_custom_call.1} parent=11 // pred_region
          %s196 = ssub.s32 2048, 2048
          %197 = vsyncadd [#allocation6], %s196
          %s198 = sshll.u32 [#allocation5], 4
          %s199 = int_to_ptr.vmem [resolvable:$true] %s198
          %204 = dma.hbm_to_vmem [thread:$0]  %s1, 2048, %s199, [#allocation6], 128, 128, 8
        $region16: #{tpu_custom_call.1} parent=11 // pred_fallthru
          _
        // Predicated region
        $region17: #{tpu_custom_call.1} parent=11 // pred_check
          %p205 = pneg %p88
        $region18: #{tpu_custom_call.1} parent=11 // pred_check_branch
          %207 = sbr.rel (%p205) target = $region20
        $region19: #{tpu_custom_call.1} parent=11 // pred_region
          _
        $region20: #{tpu_custom_call.1} parent=11 // pred_fallthru
          _
        // Predicated region
        $region21: #{tpu_custom_call.1} parent=11 // pred_check
          %p208 = pneg %p109
        $region22: #{tpu_custom_call.1} parent=11 // pred_check_branch
          %210 = sbr.rel (%p208) target = $region24
        $region23: #{tpu_custom_call.1} parent=11 // pred_region
          %s212 = ssub.s32 2048, 2048
          %213 = vsyncadd [#allocation6], %s212
          %s214 = sshll.u32 [#allocation7], 4
          %s215 = int_to_ptr.vmem [resolvable:$true] %s214
          %220 = dma.hbm_to_vmem [thread:$0]  %s3, 2048, %s215, [#allocation6], 128, 128, 8
        $region24: #{tpu_custom_call.1} parent=11 // pred_fallthru
          _
        // Predicated region
        $region25: #{tpu_custom_call.1} parent=11 // pred_check
          %p221 = pneg %p130
        $region26: #{tpu_custom_call.1} parent=11 // pred_check_branch
          %223 = sbr.rel (%p221) target = $region28
        $region27: #{tpu_custom_call.1} parent=11 // pred_region
          _
        $region28: #{tpu_custom_call.1} parent=11 // pred_fallthru
          _
        // Predicated region
        $region29: #{tpu_custom_call.1} parent=11 // pred_check
          %p224 = pneg %p151
        $region30: #{tpu_custom_call.1} parent=11 // pred_check_branch
          %226 = sbr.rel (%p224) target = $region32
        $region31: #{tpu_custom_call.1} parent=11 // pred_region
          %s228 = ssub.s32 4096, 4096
          %229 = vsyncadd [#allocation9], %s228
          %s230 = sshll.u32 [#allocation8], 4
          %s231 = int_to_ptr.vmem [resolvable:$true] %s230
          %236 = dma.hbm_to_vmem [thread:$0]  %s5, 4096, %s231, [#allocation9], 256, 256, 16
        $region32: #{tpu_custom_call.1} parent=11 // pred_fallthru
          _
      $region12: #{tpu_custom_call.1} parent=5 // pred_fallthru
        _
      %p237 = scmp.lt.s32.totalorder %s20, 2
      // Predicated region
      $region33: #{tpu_custom_call.1} parent=5 // pred_check
        %p238 = pneg %p237
      $region34: #{tpu_custom_call.1} parent=5 // pred_check_branch
        %240 = sbr.rel (%p238) target = $region36
      $region35: #{tpu_custom_call.1} parent=5 // pred_region
        // Predicated region
        $region37: #{tpu_custom_call.1} parent=35 // pred_check
          %p241 = pneg %p40
        $region38: #{tpu_custom_call.1} parent=35 // pred_check_branch
          %243 = sbr.rel (%p241) target = $region40
        $region39: #{tpu_custom_call.1} parent=35 // pred_region
          %s244 = sand.u32 %s30, 1
          %s245 = scalar_lea.sflag [#allocation3], %s244
          %s246 = sand.u32 %s30, 1
          %s247 = smul.addr %s246, 128
          %s248 = scalar_lea.vmem [#allocation2], %s247
          %s249 = smul.u32 16, %s20
          %s251 = ssub.s32 2048, 2048
          %252 = vsyncadd %s245, %s251
          %s253 = smul.addr %s249, 128
          %s254 = scalar_lea.hbm %s0, %s253
          %s255 = sshll.u32 %s248, 4
          %s256 = int_to_ptr.vmem [resolvable:$true] %s255
          %261 = dma.hbm_to_vmem [thread:$0]  %s254, 2048, %s256, %s245, 128, 128, 8
        $region40: #{tpu_custom_call.1} parent=35 // pred_fallthru
          _
      $region36: #{tpu_custom_call.1} parent=5 // pred_fallthru
        _
      %p262 = scmp.le.s32.totalorder 1, %s20
      %p263 = scmp.lt.s32.totalorder %s20, 3
      %p264 = pnand %p262, %p263
      %p265 = pneg %p264
      // Predicated region
      $region41: #{tpu_custom_call.1} parent=5 // pred_check
        _
      $region42: #{tpu_custom_call.1} parent=5 // pred_check_branch
        %267 = sbr.rel (%p264) target = $region44
      $region43: #{tpu_custom_call.1} parent=5 // pred_region
        %s268 = ssub.s32 %s20, 1
        %s269 = sand.u32 %s33, 1
        %s270 = scalar_lea.sflag [#allocation3], %s269
        %s271 = sand.u32 %s33, 1
        %s272 = smul.addr %s271, 128
        %s273 = scalar_lea.vmem [#allocation2], %s272
        // Predicated region
        $region45: #{tpu_custom_call.1} parent=43 // pred_check
          %p274 = pneg %p46
        $region46: #{tpu_custom_call.1} parent=43 // pred_check_branch
          %276 = sbr.rel (%p274) target = $region48
        $region47: #{tpu_custom_call.1} parent=43 // pred_region
          %277 = dma.done %s270, 2048
        $region48: #{tpu_custom_call.1} parent=43 // pred_fallthru
          _
        // Predicated region
        $region49: #{tpu_custom_call.1} parent=43 // pred_check
          %p278 = pneg %p67
        $region50: #{tpu_custom_call.1} parent=43 // pred_check_branch
          %280 = sbr.rel (%p278) target = $region52
        $region51: #{tpu_custom_call.1} parent=43 // pred_region
          %281 = dma.done [#allocation6], 2048
        $region52: #{tpu_custom_call.1} parent=43 // pred_fallthru
          _
        // Predicated region
        $region53: #{tpu_custom_call.1} parent=43 // pred_check
          %p282 = pneg %p109
        $region54: #{tpu_custom_call.1} parent=43 // pred_check_branch
          %284 = sbr.rel (%p282) target = $region56
        $region55: #{tpu_custom_call.1} parent=43 // pred_region
          %285 = dma.done [#allocation6], 2048
        $region56: #{tpu_custom_call.1} parent=43 // pred_fallthru
          _
        // Predicated region
        $region57: #{tpu_custom_call.1} parent=43 // pred_check
          %p286 = pneg %p151
        $region58: #{tpu_custom_call.1} parent=43 // pred_check_branch
          %288 = sbr.rel (%p286) target = $region60
        $region59: #{tpu_custom_call.1} parent=43 // pred_region
          %289 = dma.done [#allocation9], 4096
        $region60: #{tpu_custom_call.1} parent=43 // pred_fallthru
          _
        %s290 = sand.u32 %s33, 1
        %s291 = scalar_lea.sflag [#allocation3], %s290
        %s292 = sand.u32 %s33, 1
        %s293 = smul.addr %s292, 128
        %s294 = scalar_lea.vmem [#allocation2], %s293
        %p295 = pneg %p46
        %p296 = pneg %p43
        %p297 = pneg %p67
        %p298 = pneg %p64
        %p299 = pneg %p88
        %p300 = pneg %p85
        %p301 = pneg %p109
        %p302 = pneg %p106
        %p303 = pneg %p130
        %p304 = pneg %p127
        %p305 = pneg %p151
        %p306 = pneg %p148
        %p307 = pneg %p177
        %p308 = pneg %p174
        %s309 = sand.u32 %s164, 1
        %s310 = scalar_lea.sflag [#allocation4], %s309
        %s311 = sand.u32 %s164, 1
        %s312 = smul.addr %s311, 256
        %s313 = scalar_lea.vmem [#allocation10], %s312
        %s314 = smul.u32 16, %s25
        %s315 = smul.u32 16, %s25
        %v316 = vld [vmem:[%s273] sm:$0xff]
        %v317 = vld [vmem:[%s273 + $0x8] sm:$0xff]
        %v318 = vld [vmem:[%s273 + $0x10] sm:$0xff]
        %v319 = vld [vmem:[%s273 + $0x18] sm:$0xff]
        %v320 = vld [vmem:[%s273 + $0x20] sm:$0xff]
        %v321 = vld [vmem:[%s273 + $0x28] sm:$0xff]
        %v322 = vld [vmem:[%s273 + $0x30] sm:$0xff]
        %v323 = vld [vmem:[%s273 + $0x38] sm:$0xff]
        %v324 = vld [vmem:[%s273 + $0x40] sm:$0xff]
        %v325 = vld [vmem:[%s273 + $0x48] sm:$0xff]
        %v326 = vld [vmem:[%s273 + $0x50] sm:$0xff]
        %v327 = vld [vmem:[%s273 + $0x58] sm:$0xff]
        %v328 = vld [vmem:[%s273 + $0x60] sm:$0xff]
        %v329 = vld [vmem:[%s273 + $0x68] sm:$0xff]
        %v330 = vld [vmem:[%s273 + $0x70] sm:$0xff]
        %v331 = vld [vmem:[%s273 + $0x78] sm:$0xff]
        %v332 = vld [vmem:[#allocation5] sm:$0xff]
        %v333 = vld [vmem:[#allocation5 + $0x8] sm:$0xff]
        %v334 = vld [vmem:[#allocation5 + $0x10] sm:$0xff]
        %v335 = vld [vmem:[#allocation5 + $0x18] sm:$0xff]
        %v336 = vld [vmem:[#allocation5 + $0x20] sm:$0xff]
        %v337 = vld [vmem:[#allocation5 + $0x28] sm:$0xff]
        %v338 = vld [vmem:[#allocation5 + $0x30] sm:$0xff]
        %v339 = vld [vmem:[#allocation5 + $0x38] sm:$0xff]
        %v340 = vld [vmem:[#allocation5 + $0x40] sm:$0xff]
        %v341 = vld [vmem:[#allocation5 + $0x48] sm:$0xff]
        %v342 = vld [vmem:[#allocation5 + $0x50] sm:$0xff]
        %v343 = vld [vmem:[#allocation5 + $0x58] sm:$0xff]
        %v344 = vld [vmem:[#allocation5 + $0x60] sm:$0xff]
        %v345 = vld [vmem:[#allocation5 + $0x68] sm:$0xff]
        %v346 = vld [vmem:[#allocation5 + $0x70] sm:$0xff]
        %v347 = vld [vmem:[#allocation5 + $0x78] sm:$0xff]
        %v348 = vld [vmem:[%s2] sm:$0x1]
        %v350 = vlaneseq
        %v351 = vshrl.u32 %v350, 7
        %v352 = vsub.s32 0, %v351
        %v353 = vrot.slane %v348, %v352
        %355 = vmatprep.subr.mxu0 0.0
        %356 = vmatpush1.msra.mxu0 %v332
        %357 = vmatprep.subr.mxu0 0.0
        %358 = vmatpush1.msra.mxu0 %v333
        %359 = vmatprep.subr.mxu0 0.0
        %360 = vmatpush1.msra.mxu0 %v334
        %361 = vmatprep.subr.mxu0 0.0
        %362 = vmatpush1.msra.mxu0 %v335
        %363 = vmatprep.subr.mxu0 0.0
        %364 = vmatpush1.msra.mxu0 %v336
        %365 = vmatprep.subr.mxu0 0.0
        %366 = vmatpush1.msra.mxu0 %v337
        %367 = vmatprep.subr.mxu0 0.0
        %368 = vmatpush1.msra.mxu0 %v338
        %369 = vmatprep.subr.mxu0 0.0
        %370 = vmatpush1.msra.mxu0 %v339
        %371 = vmatprep.subr.mxu0 0.0
        %372 = vmatpush1.msra.mxu0 %v340
        %373 = vmatprep.subr.mxu0 0.0
        %374 = vmatpush1.msra.mxu0 %v341
        %375 = vmatprep.subr.mxu0 0.0
        %376 = vmatpush1.msra.mxu0 %v342
        %377 = vmatprep.subr.mxu0 0.0
        %378 = vmatpush1.msra.mxu0 %v343
        %379 = vmatprep.subr.mxu0 0.0
        %380 = vmatpush1.msra.mxu0 %v344
        %381 = vmatprep.subr.mxu0 0.0
        %382 = vmatpush1.msra.mxu0 %v345
        %383 = vmatprep.subr.mxu0 0.0
        %384 = vmatpush1.msra.mxu0 %v346
        %385 = vmatprep.subr.mxu0 0.0
        %386 = vmatpush1.msra.mxu0 %v347
        %387 = vmatprep.subr.mxu0 0.0
        %388 = vmatpush1.msra.mxu0 0.0
        %389 = vmatprep.subr.mxu0 0.0
        %390 = vmatpush1.msra.mxu0 0.0
        %391 = vmatprep.subr.mxu0 0.0
        %392 = vmatpush1.msra.mxu0 0.0
        %393 = vmatprep.subr.mxu0 0.0
        %394 = vmatpush1.msra.mxu0 0.0
        %395 = vmatprep.subr.mxu0 0.0
        %396 = vmatpush1.msra.mxu0 0.0
        %397 = vmatprep.subr.mxu0 0.0
        %398 = vmatpush1.msra.mxu0 0.0
        %399 = vmatprep.subr.mxu0 0.0
        %400 = vmatpush1.msra.mxu0 0.0
        %401 = vmatprep.subr.mxu0 0.0
        %402 = vmatpush1.msra.mxu0 0.0
        %403 = vmatprep.subr.mxu0 0.0
        %404 = vmatpush1.msra.mxu0 0.0
        %405 = vmatprep.subr.mxu0 0.0
        %406 = vmatpush1.msra.mxu0 0.0
        %407 = vmatprep.subr.mxu0 0.0
        %408 = vmatpush1.msra.mxu0 0.0
        %409 = vmatprep.subr.mxu0 0.0
        %410 = vmatpush1.msra.mxu0 0.0
        %411 = vmatprep.subr.mxu0 0.0
        %412 = vmatpush1.msra.mxu0 0.0
        %413 = vmatprep.subr.mxu0 0.0
        %414 = vmatpush1.msra.mxu0 0.0
        %415 = vmatprep.subr.mxu0 0.0
        %416 = vmatpush1.msra.mxu0 0.0
        %417 = vmatprep.subr.mxu0 0.0
        %418 = vmatpush1.msra.mxu0 0.0
        %419 = vmatprep.mubr.f32.mxu0 0.0
        %420 = vmatmul.mubr.f32.gmra.mrb[0].mxu0 %v316
        %v421 = vpop.f32.mrb[0].mxu0
        %v422 = vadd.f32 %v353, %v421
        %v423 = vpop.f32.mrb[0].mxu0
        %424 = vmatprep.mubr.f32.mxu0 0.0
        %425 = vmatmul.mubr.f32.gmra.mrb[0].mxu0 %v317
        %v426 = vpop.f32.mrb[0].mxu0
        %v427 = vadd.f32 %v353, %v426
        %v428 = vpop.f32.mrb[0].mxu0
        %429 = vmatprep.mubr.f32.mxu0 0.0
        %430 = vmatmul.mubr.f32.gmra.mrb[0].mxu0 %v318
        %v431 = vpop.f32.mrb[0].mxu0
        %v432 = vadd.f32 %v353, %v431
        %v433 = vpop.f32.mrb[0].mxu0
        %434 = vmatprep.mubr.f32.mxu0 0.0
        %435 = vmatmul.mubr.f32.gmra.mrb[0].mxu0 %v319
        %v436 = vpop.f32.mrb[0].mxu0
        %v437 = vadd.f32 %v353, %v436
        %v438 = vpop.f32.mrb[0].mxu0
        %439 = vmatprep.mubr.f32.mxu0 0.0
        %440 = vmatmul.mubr.f32.gmra.mrb[0].mxu0 %v320
        %v441 = vpop.f32.mrb[0].mxu0
        %v442 = vadd.f32 %v353, %v441
        %v443 = vpop.f32.mrb[0].mxu0
        %444 = vmatprep.mubr.f32.mxu0 0.0
        %445 = vmatmul.mubr.f32.gmra.mrb[0].mxu0 %v321
        %v446 = vpop.f32.mrb[0].mxu0
        %v447 = vadd.f32 %v353, %v446
        %v448 = vpop.f32.mrb[0].mxu0
        %449 = vmatprep.mubr.f32.mxu0 0.0
        %450 = vmatmul.mubr.f32.gmra.mrb[0].mxu0 %v322
        %v451 = vpop.f32.mrb[0].mxu0
        %v452 = vadd.f32 %v353, %v451
        %v453 = vpop.f32.mrb[0].mxu0
        %454 = vmatprep.mubr.f32.mxu0 0.0
        %455 = vmatmul.mubr.f32.gmra.mrb[0].mxu0 %v323
        %v456 = vpop.f32.mrb[0].mxu0
        %v457 = vadd.f32 %v353, %v456
        %v458 = vpop.f32.mrb[0].mxu0
        %459 = vmatprep.mubr.f32.mxu0 0.0
        %460 = vmatmul.mubr.f32.gmra.mrb[0].mxu0 %v324
        %v461 = vpop.f32.mrb[0].mxu0
        %v462 = vadd.f32 %v353, %v461
        %v463 = vpop.f32.mrb[0].mxu0
        %464 = vmatprep.mubr.f32.mxu0 0.0
        %465 = vmatmul.mubr.f32.gmra.mrb[0].mxu0 %v325
        %v466 = vpop.f32.mrb[0].mxu0
        %v467 = vadd.f32 %v353, %v466
        %v468 = vpop.f32.mrb[0].mxu0
        %469 = vmatprep.mubr.f32.mxu0 0.0
        %470 = vmatmul.mubr.f32.gmra.mrb[0].mxu0 %v326
        %v471 = vpop.f32.mrb[0].mxu0
        %v472 = vadd.f32 %v353, %v471
        %v473 = vpop.f32.mrb[0].mxu0
        %474 = vmatprep.mubr.f32.mxu0 0.0
        %475 = vmatmul.mubr.f32.gmra.mrb[0].mxu0 %v327
        %v476 = vpop.f32.mrb[0].mxu0
        %v477 = vadd.f32 %v353, %v476
        %v478 = vpop.f32.mrb[0].mxu0
        %479 = vmatprep.mubr.f32.mxu0 0.0
        %480 = vmatmul.mubr.f32.gmra.mrb[0].mxu0 %v328
        %v481 = vpop.f32.mrb[0].mxu0
        %v482 = vadd.f32 %v353, %v481
        %v483 = vpop.f32.mrb[0].mxu0
        %484 = vmatprep.mubr.f32.mxu0 0.0
        %485 = vmatmul.mubr.f32.gmra.mrb[0].mxu0 %v329
        %v486 = vpop.f32.mrb[0].mxu0
        %v487 = vadd.f32 %v353, %v486
        %v488 = vpop.f32.mrb[0].mxu0
        %489 = vmatprep.mubr.f32.mxu0 0.0
        %490 = vmatmul.mubr.f32.gmra.mrb[0].mxu0 %v330
        %v491 = vpop.f32.mrb[0].mxu0
        %v492 = vadd.f32 %v353, %v491
        %v493 = vpop.f32.mrb[0].mxu0
        %494 = vmatprep.mubr.f32.mxu0 0.0
        %495 = vmatmul.mubr.f32.gmra.mrb[0].mxu0 %v331
        %v496 = vpop.f32.mrb[0].mxu0
        %v497 = vadd.f32 %v353, %v496
        %v498 = vpop.f32.mrb[0].mxu0
        %499 = vdwg.mxu0
        %v500 = vmax.f32 %v422, 0.0
        %v501 = vmax.f32 %v427, 0.0
        %v502 = vmax.f32 %v432, 0.0
        %v503 = vmax.f32 %v437, 0.0
        %v504 = vmax.f32 %v442, 0.0
        %v505 = vmax.f32 %v447, 0.0
        %v506 = vmax.f32 %v452, 0.0
        %v507 = vmax.f32 %v457, 0.0
        %v508 = vmax.f32 %v462, 0.0
        %v509 = vmax.f32 %v467, 0.0
        %v510 = vmax.f32 %v472, 0.0
        %v511 = vmax.f32 %v477, 0.0
        %v512 = vmax.f32 %v482, 0.0
        %v513 = vmax.f32 %v487, 0.0
        %v514 = vmax.f32 %v492, 0.0
        %v515 = vmax.f32 %v497, 0.0
        %v516 = vld [vmem:[#allocation7] sm:$0xff]
        %v517 = vld [vmem:[#allocation7 + $0x8] sm:$0xff]
        %v518 = vld [vmem:[#allocation7 + $0x10] sm:$0xff]
        %v519 = vld [vmem:[#allocation7 + $0x18] sm:$0xff]
        %v520 = vld [vmem:[#allocation7 + $0x20] sm:$0xff]
        %v521 = vld [vmem:[#allocation7 + $0x28] sm:$0xff]
        %v522 = vld [vmem:[#allocation7 + $0x30] sm:$0xff]
        %v523 = vld [vmem:[#allocation7 + $0x38] sm:$0xff]
        %v524 = vld [vmem:[#allocation7 + $0x40] sm:$0xff]
        %v525 = vld [vmem:[#allocation7 + $0x48] sm:$0xff]
        %v526 = vld [vmem:[#allocation7 + $0x50] sm:$0xff]
        %v527 = vld [vmem:[#allocation7 + $0x58] sm:$0xff]
        %v528 = vld [vmem:[#allocation7 + $0x60] sm:$0xff]
        %v529 = vld [vmem:[#allocation7 + $0x68] sm:$0xff]
        %v530 = vld [vmem:[#allocation7 + $0x70] sm:$0xff]
        %v531 = vld [vmem:[#allocation7 + $0x78] sm:$0xff]
        %v532 = vld [vmem:[%s4] sm:$0x1]
        %v534 = vlaneseq
        %v535 = vshrl.u32 %v534, 7
        %v536 = vsub.s32 0, %v535
        %v537 = vrot.slane %v532, %v536
        %539 = vmatprep.subr.mxu0 0.0
        %540 = vmatpush1.msra.mxu0 %v516
        %541 = vmatprep.subr.mxu0 0.0
        %542 = vmatpush1.msra.mxu0 %v517
        %543 = vmatprep.subr.mxu0 0.0
        %544 = vmatpush1.msra.mxu0 %v518
        %545 = vmatprep.subr.mxu0 0.0
        %546 = vmatpush1.msra.mxu0 %v519
        %547 = vmatprep.subr.mxu0 0.0
        %548 = vmatpush1.msra.mxu0 %v520
        %549 = vmatprep.subr.mxu0 0.0
        %550 = vmatpush1.msra.mxu0 %v521
        %551 = vmatprep.subr.mxu0 0.0
        %552 = vmatpush1.msra.mxu0 %v522
        %553 = vmatprep.subr.mxu0 0.0
        %554 = vmatpush1.msra.mxu0 %v523
        %555 = vmatprep.subr.mxu0 0.0
        %556 = vmatpush1.msra.mxu0 %v524
        %557 = vmatprep.subr.mxu0 0.0
        %558 = vmatpush1.msra.mxu0 %v525
        %559 = vmatprep.subr.mxu0 0.0
        %560 = vmatpush1.msra.mxu0 %v526
        %561 = vmatprep.subr.mxu0 0.0
        %562 = vmatpush1.msra.mxu0 %v527
        %563 = vmatprep.subr.mxu0 0.0
        %564 = vmatpush1.msra.mxu0 %v528
        %565 = vmatprep.subr.mxu0 0.0
        %566 = vmatpush1.msra.mxu0 %v529
        %567 = vmatprep.subr.mxu0 0.0
        %568 = vmatpush1.msra.mxu0 %v530
        %569 = vmatprep.subr.mxu0 0.0
        %570 = vmatpush1.msra.mxu0 %v531
        %571 = vmatprep.subr.mxu0 0.0
        %572 = vmatpush1.msra.mxu0 0.0
        %573 = vmatprep.subr.mxu0 0.0
        %574 = vmatpush1.msra.mxu0 0.0
        %575 = vmatprep.subr.mxu0 0.0
        %576 = vmatpush1.msra.mxu0 0.0
        %577 = vmatprep.subr.mxu0 0.0
        %578 = vmatpush1.msra.mxu0 0.0
        %579 = vmatprep.subr.mxu0 0.0
        %580 = vmatpush1.msra.mxu0 0.0
        %581 = vmatprep.subr.mxu0 0.0
        %582 = vmatpush1.msra.mxu0 0.0
        %583 = vmatprep.subr.mxu0 0.0
        %584 = vmatpush1.msra.mxu0 0.0
        %585 = vmatprep.subr.mxu0 0.0
        %586 = vmatpush1.msra.mxu0 0.0
        %587 = vmatprep.subr.mxu0 0.0
        %588 = vmatpush1.msra.mxu0 0.0
        %589 = vmatprep.subr.mxu0 0.0
        %590 = vmatpush1.msra.mxu0 0.0
        %591 = vmatprep.subr.mxu0 0.0
        %592 = vmatpush1.msra.mxu0 0.0
        %593 = vmatprep.subr.mxu0 0.0
        %594 = vmatpush1.msra.mxu0 0.0
        %595 = vmatprep.subr.mxu0 0.0
        %596 = vmatpush1.msra.mxu0 0.0
        %597 = vmatprep.subr.mxu0 0.0
        %598 = vmatpush1.msra.mxu0 0.0
        %599 = vmatprep.subr.mxu0 0.0
        %600 = vmatpush1.msra.mxu0 0.0
        %601 = vmatprep.subr.mxu0 0.0
        %602 = vmatpush1.msra.mxu0 0.0
        %603 = vmatprep.mubr.f32.mxu0 0.0
        %604 = vmatmul.mubr.f32.gmra.mrb[0].mxu0 %v500
        %v605 = vpop.f32.mrb[0].mxu0
        %v606 = vadd.f32 %v537, %v605
        %v607 = vpop.f32.mrb[0].mxu0
        %608 = vmatprep.mubr.f32.mxu0 0.0
        %609 = vmatmul.mubr.f32.gmra.mrb[0].mxu0 %v501
        %v610 = vpop.f32.mrb[0].mxu0
        %v611 = vadd.f32 %v537, %v610
        %v612 = vpop.f32.mrb[0].mxu0
        %613 = vmatprep.mubr.f32.mxu0 0.0
        %614 = vmatmul.mubr.f32.gmra.mrb[0].mxu0 %v502
        %v615 = vpop.f32.mrb[0].mxu0
        %v616 = vadd.f32 %v537, %v615
        %v617 = vpop.f32.mrb[0].mxu0
        %618 = vmatprep.mubr.f32.mxu0 0.0
        %619 = vmatmul.mubr.f32.gmra.mrb[0].mxu0 %v503
        %v620 = vpop.f32.mrb[0].mxu0
        %v621 = vadd.f32 %v537, %v620
        %v622 = vpop.f32.mrb[0].mxu0
        %623 = vmatprep.mubr.f32.mxu0 0.0
        %624 = vmatmul.mubr.f32.gmra.mrb[0].mxu0 %v504
        %v625 = vpop.f32.mrb[0].mxu0
        %v626 = vadd.f32 %v537, %v625
        %v627 = vpop.f32.mrb[0].mxu0
        %628 = vmatprep.mubr.f32.mxu0 0.0
        %629 = vmatmul.mubr.f32.gmra.mrb[0].mxu0 %v505
        %v630 = vpop.f32.mrb[0].mxu0
        %v631 = vadd.f32 %v537, %v630
        %v632 = vpop.f32.mrb[0].mxu0
        %633 = vmatprep.mubr.f32.mxu0 0.0
        %634 = vmatmul.mubr.f32.gmra.mrb[0].mxu0 %v506
        %v635 = vpop.f32.mrb[0].mxu0
        %v636 = vadd.f32 %v537, %v635
        %v637 = vpop.f32.mrb[0].mxu0
        %638 = vmatprep.mubr.f32.mxu0 0.0
        %639 = vmatmul.mubr.f32.gmra.mrb[0].mxu0 %v507
        %v640 = vpop.f32.mrb[0].mxu0
        %v641 = vadd.f32 %v537, %v640
        %v642 = vpop.f32.mrb[0].mxu0
        %643 = vmatprep.mubr.f32.mxu0 0.0
        %644 = vmatmul.mubr.f32.gmra.mrb[0].mxu0 %v508
        %v645 = vpop.f32.mrb[0].mxu0
        %v646 = vadd.f32 %v537, %v645
        %v647 = vpop.f32.mrb[0].mxu0
        %648 = vmatprep.mubr.f32.mxu0 0.0
        %649 = vmatmul.mubr.f32.gmra.mrb[0].mxu0 %v509
        %v650 = vpop.f32.mrb[0].mxu0
        %v651 = vadd.f32 %v537, %v650
        %v652 = vpop.f32.mrb[0].mxu0
        %653 = vmatprep.mubr.f32.mxu0 0.0
        %654 = vmatmul.mubr.f32.gmra.mrb[0].mxu0 %v510
        %v655 = vpop.f32.mrb[0].mxu0
        %v656 = vadd.f32 %v537, %v655
        %v657 = vpop.f32.mrb[0].mxu0
        %658 = vmatprep.mubr.f32.mxu0 0.0
        %659 = vmatmul.mubr.f32.gmra.mrb[0].mxu0 %v511
        %v660 = vpop.f32.mrb[0].mxu0
        %v661 = vadd.f32 %v537, %v660
        %v662 = vpop.f32.mrb[0].mxu0
        %663 = vmatprep.mubr.f32.mxu0 0.0
        %664 = vmatmul.mubr.f32.gmra.mrb[0].mxu0 %v512
        %v665 = vpop.f32.mrb[0].mxu0
        %v666 = vadd.f32 %v537, %v665
        %v667 = vpop.f32.mrb[0].mxu0
        %668 = vmatprep.mubr.f32.mxu0 0.0
        %669 = vmatmul.mubr.f32.gmra.mrb[0].mxu0 %v513
        %v670 = vpop.f32.mrb[0].mxu0
        %v671 = vadd.f32 %v537, %v670
        %v672 = vpop.f32.mrb[0].mxu0
        %673 = vmatprep.mubr.f32.mxu0 0.0
        %674 = vmatmul.mubr.f32.gmra.mrb[0].mxu0 %v514
        %v675 = vpop.f32.mrb[0].mxu0
        %v676 = vadd.f32 %v537, %v675
        %v677 = vpop.f32.mrb[0].mxu0
        %678 = vmatprep.mubr.f32.mxu0 0.0
        %679 = vmatmul.mubr.f32.gmra.mrb[0].mxu0 %v515
        %v680 = vpop.f32.mrb[0].mxu0
        %v681 = vadd.f32 %v537, %v680
        %v682 = vpop.f32.mrb[0].mxu0
        %683 = vdwg.mxu0
        %v684 = vmax.f32 %v606, 0.0
        %v685 = vmax.f32 %v611, 0.0
        %v686 = vmax.f32 %v616, 0.0
        %v687 = vmax.f32 %v621, 0.0
        %v688 = vmax.f32 %v626, 0.0
        %v689 = vmax.f32 %v631, 0.0
        %v690 = vmax.f32 %v636, 0.0
        %v691 = vmax.f32 %v641, 0.0
        %v692 = vmax.f32 %v646, 0.0
        %v693 = vmax.f32 %v651, 0.0
        %v694 = vmax.f32 %v656, 0.0
        %v695 = vmax.f32 %v661, 0.0
        %v696 = vmax.f32 %v666, 0.0
        %v697 = vmax.f32 %v671, 0.0
        %v698 = vmax.f32 %v676, 0.0
        %v699 = vmax.f32 %v681, 0.0
        %v700 = vld [vmem:[#allocation8] sm:$0xff]
        %v701 = vld [vmem:[#allocation8 + $0x8] sm:$0xff]
        %v702 = vld [vmem:[#allocation8 + $0x10] sm:$0xff]
        %v703 = vld [vmem:[#allocation8 + $0x18] sm:$0xff]
        %v704 = vld [vmem:[#allocation8 + $0x20] sm:$0xff]
        %v705 = vld [vmem:[#allocation8 + $0x28] sm:$0xff]
        %v706 = vld [vmem:[#allocation8 + $0x30] sm:$0xff]
        %v707 = vld [vmem:[#allocation8 + $0x38] sm:$0xff]
        %v708 = vld [vmem:[#allocation8 + $0x40] sm:$0xff]
        %v709 = vld [vmem:[#allocation8 + $0x48] sm:$0xff]
        %v710 = vld [vmem:[#allocation8 + $0x50] sm:$0xff]
        %v711 = vld [vmem:[#allocation8 + $0x58] sm:$0xff]
        %v712 = vld [vmem:[#allocation8 + $0x60] sm:$0xff]
        %v713 = vld [vmem:[#allocation8 + $0x68] sm:$0xff]
        %v714 = vld [vmem:[#allocation8 + $0x70] sm:$0xff]
        %v715 = vld [vmem:[#allocation8 + $0x78] sm:$0xff]
        %v716 = vld [vmem:[#allocation8 + $0x80] sm:$0xff]
        %v717 = vld [vmem:[#allocation8 + $0x88] sm:$0xff]
        %v718 = vld [vmem:[#allocation8 + $0x90] sm:$0xff]
        %v719 = vld [vmem:[#allocation8 + $0x98] sm:$0xff]
        %v720 = vld [vmem:[#allocation8 + $0xa0] sm:$0xff]
        %v721 = vld [vmem:[#allocation8 + $0xa8] sm:$0xff]
        %v722 = vld [vmem:[#allocation8 + $0xb0] sm:$0xff]
        %v723 = vld [vmem:[#allocation8 + $0xb8] sm:$0xff]
        %v724 = vld [vmem:[#allocation8 + $0xc0] sm:$0xff]
        %v725 = vld [vmem:[#allocation8 + $0xc8] sm:$0xff]
        %v726 = vld [vmem:[#allocation8 + $0xd0] sm:$0xff]
        %v727 = vld [vmem:[#allocation8 + $0xd8] sm:$0xff]
        %v728 = vld [vmem:[#allocation8 + $0xe0] sm:$0xff]
        %v729 = vld [vmem:[#allocation8 + $0xe8] sm:$0xff]
        %v730 = vld [vmem:[#allocation8 + $0xf0] sm:$0xff]
        %v731 = vld [vmem:[#allocation8 + $0xf8] sm:$0xff]
        %732 = vmatprep.subr.mxu0 %v701
        %733 = vmatpush1.msra.mxu0 %v700
        %734 = vmatprep.subr.mxu0 %v703
        %735 = vmatpush1.msra.mxu0 %v702
        %736 = vmatprep.subr.mxu0 %v705
        %737 = vmatpush1.msra.mxu0 %v704
        %738 = vmatprep.subr.mxu0 %v707
        %739 = vmatpush1.msra.mxu0 %v706
        %740 = vmatprep.subr.mxu0 %v709
        %741 = vmatpush1.msra.mxu0 %v708
        %742 = vmatprep.subr.mxu0 %v711
        %743 = vmatpush1.msra.mxu0 %v710
        %744 = vmatprep.subr.mxu0 %v713
        %745 = vmatpush1.msra.mxu0 %v712
        %746 = vmatprep.subr.mxu0 %v715
        %747 = vmatpush1.msra.mxu0 %v714
        %748 = vmatprep.subr.mxu0 %v717
        %749 = vmatpush1.msra.mxu0 %v716
        %750 = vmatprep.subr.mxu0 %v719
        %751 = vmatpush1.msra.mxu0 %v718
        %752 = vmatprep.subr.mxu0 %v721
        %753 = vmatpush1.msra.mxu0 %v720
        %754 = vmatprep.subr.mxu0 %v723
        %755 = vmatpush1.msra.mxu0 %v722
        %756 = vmatprep.subr.mxu0 %v725
        %757 = vmatpush1.msra.mxu0 %v724
        %758 = vmatprep.subr.mxu0 %v727
        %759 = vmatpush1.msra.mxu0 %v726
        %760 = vmatprep.subr.mxu0 %v729
        %761 = vmatpush1.msra.mxu0 %v728
        %762 = vmatprep.subr.mxu0 %v731
        %763 = vmatpush1.msra.mxu0 %v730
        %764 = vmatprep.subr.mxu0 0.0
        %765 = vmatpush1.msra.mxu0 0.0
        %766 = vmatprep.subr.mxu0 0.0
        %767 = vmatpush1.msra.mxu0 0.0
        %768 = vmatprep.subr.mxu0 0.0
        %769 = vmatpush1.msra.mxu0 0.0
        %770 = vmatprep.subr.mxu0 0.0
        %771 = vmatpush1.msra.mxu0 0.0
        %772 = vmatprep.subr.mxu0 0.0
        %773 = vmatpush1.msra.mxu0 0.0
        %774 = vmatprep.subr.mxu0 0.0
        %775 = vmatpush1.msra.mxu0 0.0
        %776 = vmatprep.subr.mxu0 0.0
        %777 = vmatpush1.msra.mxu0 0.0
        %778 = vmatprep.subr.mxu0 0.0
        %779 = vmatpush1.msra.mxu0 0.0
        %780 = vmatprep.subr.mxu0 0.0
        %781 = vmatpush1.msra.mxu0 0.0
        %782 = vmatprep.subr.mxu0 0.0
        %783 = vmatpush1.msra.mxu0 0.0
        %784 = vmatprep.subr.mxu0 0.0
        %785 = vmatpush1.msra.mxu0 0.0
        %786 = vmatprep.subr.mxu0 0.0
        %787 = vmatpush1.msra.mxu0 0.0
        %788 = vmatprep.subr.mxu0 0.0
        %789 = vmatpush1.msra.mxu0 0.0
        %790 = vmatprep.subr.mxu0 0.0
        %791 = vmatpush1.msra.mxu0 0.0
        %792 = vmatprep.subr.mxu0 0.0
        %793 = vmatpush1.msra.mxu0 0.0
        %794 = vmatprep.subr.mxu0 0.0
        %795 = vmatpush1.msra.mxu0 0.0
        %796 = vmatprep.mubr.f32.mxu0 0.0
        %797 = vmatmul.mubr.f32.gmra.mrb[0].mxu0 %v684
        %v798 = vpop.f32.mrb[0].mxu0
        %v799 = vadd.f32 0.0, %v798
        %v800 = vpop.f32.mrb[0].mxu0
        %v801 = vadd.f32 0.0, %v800
        %802 = vmatprep.mubr.f32.mxu0 0.0
        %803 = vmatmul.mubr.f32.gmra.mrb[0].mxu0 %v685
        %v804 = vpop.f32.mrb[0].mxu0
        %v805 = vadd.f32 0.0, %v804
        %v806 = vpop.f32.mrb[0].mxu0
        %v807 = vadd.f32 0.0, %v806
        %808 = vmatprep.mubr.f32.mxu0 0.0
        %809 = vmatmul.mubr.f32.gmra.mrb[0].mxu0 %v686
        %v810 = vpop.f32.mrb[0].mxu0
        %v811 = vadd.f32 0.0, %v810
        %v812 = vpop.f32.mrb[0].mxu0
        %v813 = vadd.f32 0.0, %v812
        %814 = vmatprep.mubr.f32.mxu0 0.0
        %815 = vmatmul.mubr.f32.gmra.mrb[0].mxu0 %v687
        %v816 = vpop.f32.mrb[0].mxu0
        %v817 = vadd.f32 0.0, %v816
        %v818 = vpop.f32.mrb[0].mxu0
        %v819 = vadd.f32 0.0, %v818
        %820 = vmatprep.mubr.f32.mxu0 0.0
        %821 = vmatmul.mubr.f32.gmra.mrb[0].mxu0 %v688
        %v822 = vpop.f32.mrb[0].mxu0
        %v823 = vadd.f32 0.0, %v822
        %v824 = vpop.f32.mrb[0].mxu0
        %v825 = vadd.f32 0.0, %v824
        %826 = vmatprep.mubr.f32.mxu0 0.0
        %827 = vmatmul.mubr.f32.gmra.mrb[0].mxu0 %v689
        %v828 = vpop.f32.mrb[0].mxu0
        %v829 = vadd.f32 0.0, %v828
        %v830 = vpop.f32.mrb[0].mxu0
        %v831 = vadd.f32 0.0, %v830
        %832 = vmatprep.mubr.f32.mxu0 0.0
        %833 = vmatmul.mubr.f32.gmra.mrb[0].mxu0 %v690
        %v834 = vpop.f32.mrb[0].mxu0
        %v835 = vadd.f32 0.0, %v834
        %v836 = vpop.f32.mrb[0].mxu0
        %v837 = vadd.f32 0.0, %v836
        %838 = vmatprep.mubr.f32.mxu0 0.0
        %839 = vmatmul.mubr.f32.gmra.mrb[0].mxu0 %v691
        %v840 = vpop.f32.mrb[0].mxu0
        %v841 = vadd.f32 0.0, %v840
        %v842 = vpop.f32.mrb[0].mxu0
        %v843 = vadd.f32 0.0, %v842
        %844 = vmatprep.mubr.f32.mxu0 0.0
        %845 = vmatmul.mubr.f32.gmra.mrb[0].mxu0 %v692
        %v846 = vpop.f32.mrb[0].mxu0
        %v847 = vadd.f32 0.0, %v846
        %v848 = vpop.f32.mrb[0].mxu0
        %v849 = vadd.f32 0.0, %v848
        %850 = vmatprep.mubr.f32.mxu0 0.0
        %851 = vmatmul.mubr.f32.gmra.mrb[0].mxu0 %v693
        %v852 = vpop.f32.mrb[0].mxu0
        %v853 = vadd.f32 0.0, %v852
        %v854 = vpop.f32.mrb[0].mxu0
        %v855 = vadd.f32 0.0, %v854
        %856 = vmatprep.mubr.f32.mxu0 0.0
        %857 = vmatmul.mubr.f32.gmra.mrb[0].mxu0 %v694
        %v858 = vpop.f32.mrb[0].mxu0
        %v859 = vadd.f32 0.0, %v858
        %v860 = vpop.f32.mrb[0].mxu0
        %v861 = vadd.f32 0.0, %v860
        %862 = vmatprep.mubr.f32.mxu0 0.0
        %863 = vmatmul.mubr.f32.gmra.mrb[0].mxu0 %v695
        %v864 = vpop.f32.mrb[0].mxu0
        %v865 = vadd.f32 0.0, %v864
        %v866 = vpop.f32.mrb[0].mxu0
        %v867 = vadd.f32 0.0, %v866
        %868 = vmatprep.mubr.f32.mxu0 0.0
        %869 = vmatmul.mubr.f32.gmra.mrb[0].mxu0 %v696
        %v870 = vpop.f32.mrb[0].mxu0
        %v871 = vadd.f32 0.0, %v870
        %v872 = vpop.f32.mrb[0].mxu0
        %v873 = vadd.f32 0.0, %v872
        %874 = vmatprep.mubr.f32.mxu0 0.0
        %875 = vmatmul.mubr.f32.gmra.mrb[0].mxu0 %v697
        %v876 = vpop.f32.mrb[0].mxu0
        %v877 = vadd.f32 0.0, %v876
        %v878 = vpop.f32.mrb[0].mxu0
        %v879 = vadd.f32 0.0, %v878
        %880 = vmatprep.mubr.f32.mxu0 0.0
        %881 = vmatmul.mubr.f32.gmra.mrb[0].mxu0 %v698
        %v882 = vpop.f32.mrb[0].mxu0
        %v883 = vadd.f32 0.0, %v882
        %v884 = vpop.f32.mrb[0].mxu0
        %v885 = vadd.f32 0.0, %v884
        %886 = vmatprep.mubr.f32.mxu0 0.0
        %887 = vmatmul.mubr.f32.gmra.mrb[0].mxu0 %v699
        %v888 = vpop.f32.mrb[0].mxu0
        %v889 = vadd.f32 0.0, %v888
        %v890 = vpop.f32.mrb[0].mxu0
        %v891 = vadd.f32 0.0, %v890
        %892 = vdwg.mxu0
        %v893 = vlaneseq
        %v894 = vand.u32 %v893, 127
        %v895 = vadd.s32 %v894, 128
        %vm896 = vcmp.lt.s32.totalorder %v894, 128
        %vm897 = vcmp.lt.s32.totalorder %v895, 128
        %v898 = vsel %vm896, 4.0, 5.0
        %v899 = vsel %vm897, 4.0, 5.0
        %v900 = vmax.f32 %v799, 0.0
        %v901 = vmax.f32 %v801, 0.0
        %v902 = vmax.f32 %v805, 0.0
        %v903 = vmax.f32 %v807, 0.0
        %v904 = vmax.f32 %v811, 0.0
        %v905 = vmax.f32 %v813, 0.0
        %v906 = vmax.f32 %v817, 0.0
        %v907 = vmax.f32 %v819, 0.0
        %v908 = vmax.f32 %v823, 0.0
        %v909 = vmax.f32 %v825, 0.0
        %v910 = vmax.f32 %v829, 0.0
        %v911 = vmax.f32 %v831, 0.0
        %v912 = vmax.f32 %v835, 0.0
        %v913 = vmax.f32 %v837, 0.0
        %v914 = vmax.f32 %v841, 0.0
        %v915 = vmax.f32 %v843, 0.0
        %v916 = vmax.f32 %v847, 0.0
        %v917 = vmax.f32 %v849, 0.0
        %v918 = vmax.f32 %v853, 0.0
        %v919 = vmax.f32 %v855, 0.0
        %v920 = vmax.f32 %v859, 0.0
        %v921 = vmax.f32 %v861, 0.0
        %v922 = vmax.f32 %v865, 0.0
        %v923 = vmax.f32 %v867, 0.0
        %v924 = vmax.f32 %v871, 0.0
        %v925 = vmax.f32 %v873, 0.0
        %v926 = vmax.f32 %v877, 0.0
        %v927 = vmax.f32 %v879, 0.0
        %v928 = vmax.f32 %v883, 0.0
        %v929 = vmax.f32 %v885, 0.0
        %v930 = vmax.f32 %v889, 0.0
        %v931 = vmax.f32 %v891, 0.0
        %v932 = vmin.f32 %v900, %v898
        %v933 = vmin.f32 %v901, %v899
        %v934 = vmin.f32 %v902, %v898
        %v935 = vmin.f32 %v903, %v899
        %v936 = vmin.f32 %v904, %v898
        %v937 = vmin.f32 %v905, %v899
        %v938 = vmin.f32 %v906, %v898
        %v939 = vmin.f32 %v907, %v899
        %v940 = vmin.f32 %v908, %v898
        %v941 = vmin.f32 %v909, %v899
        %v942 = vmin.f32 %v910, %v898
        %v943 = vmin.f32 %v911, %v899
        %v944 = vmin.f32 %v912, %v898
        %v945 = vmin.f32 %v913, %v899
        %v946 = vmin.f32 %v914, %v898
        %v947 = vmin.f32 %v915, %v899
        %v948 = vmin.f32 %v916, %v898
        %v949 = vmin.f32 %v917, %v899
        %v950 = vmin.f32 %v918, %v898
        %v951 = vmin.f32 %v919, %v899
        %v952 = vmin.f32 %v920, %v898
        %v953 = vmin.f32 %v921, %v899
        %v954 = vmin.f32 %v922, %v898
        %v955 = vmin.f32 %v923, %v899
        %v956 = vmin.f32 %v924, %v898
        %v957 = vmin.f32 %v925, %v899
        %v958 = vmin.f32 %v926, %v898
        %v959 = vmin.f32 %v927, %v899
        %v960 = vmin.f32 %v928, %v898
        %v961 = vmin.f32 %v929, %v899
        %v962 = vmin.f32 %v930, %v898
        %v963 = vmin.f32 %v931, %v899
        %v964 = vadd.f32 %v932, 0.001
        %v965 = vadd.f32 %v933, 0.001
        %v966 = vadd.f32 %v934, 0.001
        %v967 = vadd.f32 %v935, 0.001
        %v968 = vadd.f32 %v936, 0.001
        %v969 = vadd.f32 %v937, 0.001
        %v970 = vadd.f32 %v938, 0.001
        %v971 = vadd.f32 %v939, 0.001
        %v972 = vadd.f32 %v940, 0.001
        %v973 = vadd.f32 %v941, 0.001
        %v974 = vadd.f32 %v942, 0.001
        %v975 = vadd.f32 %v943, 0.001
        %v976 = vadd.f32 %v944, 0.001
        %v977 = vadd.f32 %v945, 0.001
        %v978 = vadd.f32 %v946, 0.001
        %v979 = vadd.f32 %v947, 0.001
        %v980 = vadd.f32 %v948, 0.001
        %v981 = vadd.f32 %v949, 0.001
        %v982 = vadd.f32 %v950, 0.001
        %v983 = vadd.f32 %v951, 0.001
        %v984 = vadd.f32 %v952, 0.001
        %v985 = vadd.f32 %v953, 0.001
        %v986 = vadd.f32 %v954, 0.001
        %v987 = vadd.f32 %v955, 0.001
        %v988 = vadd.f32 %v956, 0.001
        %v989 = vadd.f32 %v957, 0.001
        %v990 = vadd.f32 %v958, 0.001
        %v991 = vadd.f32 %v959, 0.001
        %v992 = vadd.f32 %v960, 0.001
        %v993 = vadd.f32 %v961, 0.001
        %v994 = vadd.f32 %v962, 0.001
        %v995 = vadd.f32 %v963, 0.001
        %996 = vst [vmem:[%s313] sm:$0xff] %v964
        %997 = vst [vmem:[%s313 + $0x8] sm:$0xff] %v965
        %998 = vst [vmem:[%s313 + $0x10] sm:$0xff] %v966
        %999 = vst [vmem:[%s313 + $0x18] sm:$0xff] %v967
        %1000 = vst [vmem:[%s313 + $0x20] sm:$0xff] %v968
        %1001 = vst [vmem:[%s313 + $0x28] sm:$0xff] %v969
        %1002 = vst [vmem:[%s313 + $0x30] sm:$0xff] %v970
        %1003 = vst [vmem:[%s313 + $0x38] sm:$0xff] %v971
        %1004 = vst [vmem:[%s313 + $0x40] sm:$0xff] %v972
        %1005 = vst [vmem:[%s313 + $0x48] sm:$0xff] %v973
        %1006 = vst [vmem:[%s313 + $0x50] sm:$0xff] %v974
        %1007 = vst [vmem:[%s313 + $0x58] sm:$0xff] %v975
        %1008 = vst [vmem:[%s313 + $0x60] sm:$0xff] %v976
        %1009 = vst [vmem:[%s313 + $0x68] sm:$0xff] %v977
        %1010 = vst [vmem:[%s313 + $0x70] sm:$0xff] %v978
        %1011 = vst [vmem:[%s313 + $0x78] sm:$0xff] %v979
        %1012 = vst [vmem:[%s313 + $0x80] sm:$0xff] %v980
        %1013 = vst [vmem:[%s313 + $0x88] sm:$0xff] %v981
        %1014 = vst [vmem:[%s313 + $0x90] sm:$0xff] %v982
        %1015 = vst [vmem:[%s313 + $0x98] sm:$0xff] %v983
        %1016 = vst [vmem:[%s313 + $0xa0] sm:$0xff] %v984
        %1017 = vst [vmem:[%s313 + $0xa8] sm:$0xff] %v985
        %1018 = vst [vmem:[%s313 + $0xb0] sm:$0xff] %v986
        %1019 = vst [vmem:[%s313 + $0xb8] sm:$0xff] %v987
        %1020 = vst [vmem:[%s313 + $0xc0] sm:$0xff] %v988
        %1021 = vst [vmem:[%s313 + $0xc8] sm:$0xff] %v989
        %1022 = vst [vmem:[%s313 + $0xd0] sm:$0xff] %v990
        %1023 = vst [vmem:[%s313 + $0xd8] sm:$0xff] %v991
        %1024 = vst [vmem:[%s313 + $0xe0] sm:$0xff] %v992
        %1025 = vst [vmem:[%s313 + $0xe8] sm:$0xff] %v993
        %1026 = vst [vmem:[%s313 + $0xf0] sm:$0xff] %v994
        %1027 = vst [vmem:[%s313 + $0xf8] sm:$0xff] %v995
        %s1028 = sand.u32 %s164, 1
        %s1029 = scalar_lea.sflag [#allocation4], %s1028
        %s1030 = sand.u32 %s164, 1
        %s1031 = smul.addr %s1030, 256
        %s1032 = scalar_lea.vmem [#allocation10], %s1031
        // Predicated region
        $region61: #{tpu_custom_call.1} parent=43 // pred_check
          %p1033 = pneg %p174
        $region62: #{tpu_custom_call.1} parent=43 // pred_check_branch
          %1035 = sbr.rel (%p1033) target = $region64
        $region63: #{tpu_custom_call.1} parent=43 // pred_region
          %s1036 = smul.u32 16, %s25
          %s1038 = ssub.s32 4096, 4096
          %1039 = vsyncadd %s1029, %s1038
          %s1040 = smul.addr %s1036, 2
          %s1041 = smul.addr %s1040, 128
          %s1042 = scalar_lea.hbm %s6, %s1041
          %s1043 = sshll.u32 %s1032, 4
          %s1044 = int_to_ptr.vmem [resolvable:$true] %s1043
          %1049 = dma.vmem_to_hbm [thread:$0]  %s1044, 4096, %s1042, %s1029, 256, 256, 16
        $region64: #{tpu_custom_call.1} parent=43 // pred_fallthru
          _
      $region44: #{tpu_custom_call.1} parent=5 // pred_fallthru
        _
      %p1050 = scmp.le.s32.totalorder 2, %s20
      // Predicated region
      $region65: #{tpu_custom_call.1} parent=5 // pred_check
        %p1051 = pneg %p1050
      $region66: #{tpu_custom_call.1} parent=5 // pred_check_branch
        %1053 = sbr.rel (%p1051) target = $region68
      $region67: #{tpu_custom_call.1} parent=5 // pred_region
        %s1054 = ssub.s32 %s20, 2
        // Predicated region
        $region69: #{tpu_custom_call.1} parent=67 // pred_check
          %p1055 = pneg %p180
        $region70: #{tpu_custom_call.1} parent=67 // pred_check_branch
          %1057 = sbr.rel (%p1055) target = $region72
        $region71: #{tpu_custom_call.1} parent=67 // pred_region
          %s1058 = sand.u32 %s165, 1
          %s1059 = scalar_lea.sflag [#allocation4], %s1058
          %s1060 = sand.u32 %s165, 1
          %s1061 = smul.addr %s1060, 256
          %s1062 = scalar_lea.vmem [#allocation10], %s1061
          %1063 = dma.done %s1059, 4096
        $region72: #{tpu_custom_call.1} parent=67 // pred_fallthru
          _
      $region68: #{tpu_custom_call.1} parent=5 // pred_fallthru
        _
    $region6: #{tpu_custom_call.1} parent=1 // loop_footer
      %s24 = sadd.s32 1, %s20
    $region7: #{tpu_custom_call.1} parent=1 // loop_footer_branch
      %19 = sbr.rel target = $region3
    $region8: #{tpu_custom_call.1} parent=1 // loop_exit
      _
    %1064 = vsyncpa [#allocation3], 1
    %s1065 = scalar_lea.sflag [#allocation3], 1
    %1066 = vsyncpa %s1065, 1
    %1067 = vsyncpa [#allocation6], 1
    %1068 = vsyncpa [#allocation9], 1
    %1069 = vsyncpa [#allocation4], 1
    %s1070 = scalar_lea.sflag [#allocation4], 1
    %1071 = vsyncpa %s1070, 1

</llo_original>
